<compile_context>
chip_gen: v7x
topology: tpu7x:2x2x1
jax: 0.10.0
libtpu: 0.0.40
codegen_flags: <defaults>
</compile_context>

<pallas_src>
import functools

import jax
import jax.numpy as jnp
from jax.experimental import pallas as pl
from jax.experimental.pallas import tpu as pltpu


def _round_up(a, b):
    return (a + b - 1) // b * b


# Detect whether this JAX supports single-buffered (resident) BlockSpecs.  If
# not, the weights get double-buffered by default and the VMEM accounting
# below must reflect that (previously this was a silent 2x under-count).
try:
    pl.BlockSpec((8, 128), lambda i: (0, 0), pipeline_mode=pl.Buffered(1))
    _SINGLE_BUFFER_OK = True
except (TypeError, AttributeError):
    _SINGLE_BUFFER_OK = False

_WEIGHT_BUFS = 1 if _SINGLE_BUFFER_OK else 2


def _resident_spec(shape):
    """BlockSpec for an operand whose block index never changes over the grid."""
    index_map = lambda i: (0,) * len(shape)
    if _SINGLE_BUFFER_OK:
        return pl.BlockSpec(shape, index_map, pipeline_mode=pl.Buffered(1))
    return pl.BlockSpec(shape, index_map)  # double-buffered; see _WEIGHT_BUFS


def _mlp_kernel(x_ref, w1_ref, b1_ref, w2_ref, b2_ref, o_ref, *, hk):
    # x_ref: (tm, D) in the caller's dtype; w1_ref: (D, H) bf16; b1_ref: (1, H) f32
    # w2_ref: (H, D) bf16; b2_ref: (1, D) f32; o_ref: (tm, D) out_dtype
    # Cast the activation tile to the MXU-native operand dtype in-VMEM (hidden
    # under the matmuls; avoids a separate wrapper-side cast pass over HBM).
    x = x_ref[...].astype(w1_ref.dtype)
    H = w1_ref.shape[1]
    acc = jnp.zeros(o_ref.shape, jnp.float32)
    # Static Python loop over H slabs: static ref slices are free views, and
    # the MXU dot of the next slab overlaps the VALU erf-GELU of this one.
    for hs in range(0, H, hk):
        he = min(hs + hk, H)
        h = jnp.dot(x, w1_ref[:, hs:he], preferred_element_type=jnp.float32)
        h = h + b1_ref[:, hs:he]
        # Exact erf-GELU in f32 (matches PyTorch nn.GELU default).  On v6e/v7x
        # a bf16 or tanh-approx GELU would halve the VALU cost if the accuracy
        # budget ever allows relaxing the exact-erf semantics.
        h = 0.5 * h * (1.0 + jax.lax.erf(h * 0.7071067811865476))
        acc = acc + jnp.dot(h.astype(w2_ref.dtype), w2_ref[hs:he, :],
                            preferred_element_type=jnp.float32)
    o_ref[...] = (acc + b2_ref[...]).astype(o_ref.dtype)


def mlp_pallas(x, w1, b1, w2, b2, *, tm=512, hk=512,
               compute_dtype=jnp.bfloat16, out_dtype=None):
    """ViT MLP forward.  x: (..., D) -> (..., D)."""
    orig_shape = x.shape
    D = orig_shape[-1]
    Din, H = w1.shape
    assert Din == D and w2.shape == (H, D)
    M = 1
    for s in orig_shape[:-1]:
        M *= s
    out_dtype = out_dtype or x.dtype

    # No pad, no cast: the partial last row tile is masked by Pallas, and the
    # bf16 cast of x happens inside the kernel (halves activation HBM traffic
    # for f32 inputs; a no-op extra cost if x is already bf16).
    x2d = x.reshape(M, D)

    # MXU-native weights.  No-op if the caller keeps bf16 master copies
    # (recommended: cast once at init, not on every forward call).
    w1c = w1.astype(compute_dtype)
    w2c = w2.astype(compute_dtype)
    b1_2d = b1.reshape(1, H).astype(jnp.float32)
    b2_2d = b2.reshape(1, D).astype(jnp.float32)

    w_item = jnp.dtype(compute_dtype).itemsize
    x_item = jnp.dtype(x.dtype).itemsize
    o_item = jnp.dtype(out_dtype).itemsize

    # Hidden-dim chunk (lane-aligned): keeps the f32 intermediate at (tm, hk).
    if H <= hk:
        hk = H
    else:
        hk = max(128, (hk // 128) * 128)

    # Row tile: multiple of 8 sublanes, clamped near M, preferring >= 2 grid
    # steps so the "parallel" axis can shard across v7x's two TensorCores.
    tm = max(8, _round_up(min(tm, M), 8))
    if pl.cdiv(M, tm) < 2 and M > 8:
        tm = max(8, _round_up(pl.cdiv(M, 2), 8))

    # Device-aware VMEM budget (v5e/v6e: 128 MiB, v7x: 64 MiB per TensorCore).
    try:
        cap = int(getattr(pltpu.get_tpu_info(), "vmem_capacity_bytes", 64 << 20))
    except Exception:
        cap = 64 << 20
    budget = int(0.85 * cap)

    weight_bytes = (w1c.size + w2c.size) * w_item
    bias_bytes = (H + D) * 4

    def vmem_needed(tm_):
        return (_WEIGHT_BUFS * (weight_bytes + bias_bytes)  # resident params
                + 2 * tm_ * D * x_item                       # x tile, 2 buffers
                + 2 * tm_ * D * o_item                       # out tile, 2 buffers
                + 2 * tm_ * hk * 4                           # fc1/GELU chunk (+slack)
                + tm_ * D * 4                                # f32 accumulator
                + (2 << 20))                                 # headroom

    while tm > 8 and vmem_needed(tm) > budget:
        tm = max(8, _round_up(tm // 2, 8))
    # TODO(synk): if _WEIGHT_BUFS*(weight_bytes+bias_bytes) alone exceeds the
    # budget, switch to streaming H slabs over an "arbitrary" grid axis with a
    # (tm, D) f32 accumulator scratch (pl.when init/finalize).

    grid = (pl.cdiv(M, tm),)
    vmem_limit = int(min(max(vmem_needed(tm), 32 << 20), budget))

    cost = pl.CostEstimate(
        flops=4 * M * D * H,                 # two (M x D x H) matmuls
        transcendentals=M * H,               # one erf per hidden activation
        bytes_accessed=(M * D * x_item + weight_bytes + bias_bytes
                        + M * D * o_item),
    )

    out2d = pl.pallas_call(
        functools.partial(_mlp_kernel, hk=hk),
        out_shape=jax.ShapeDtypeStruct((M, D), out_dtype),
        grid_spec=pltpu.PrefetchScalarGridSpec(
            num_scalar_prefetch=0,
            grid=grid,
            in_specs=[
                pl.BlockSpec((tm, D), lambda i: (i, 0)),   # x row tile
                _resident_spec((D, H)),                    # W1 (resident)
                _resident_spec((1, H)),                    # b1
                _resident_spec((H, D)),                    # W2 (resident)
                _resident_spec((1, D)),                    # b2
            ],
            out_specs=pl.BlockSpec((tm, D), lambda i: (i, 0)),
        ),
        compiler_params=pltpu.CompilerParams(
            dimension_semantics=("parallel",),
            vmem_limit_bytes=vmem_limit,
        ),
        cost_estimate=cost,
    )(x2d, w1c, b1_2d, w2c, b2_2d)

    return out2d.reshape(orig_shape)


def init_mlp_params(key, in_features, split_ratio=3, dtype=jnp.float32):
    """Deterministic init matching nn.Linear shapes (PyTorch weight is (out,in);
    we store its transpose (in,out) for row-major matmul)."""
    hidden = in_features * split_ratio
    k1, k2, k3, k4 = jax.random.split(key, 4)
    bound1 = 1.0 / jnp.sqrt(in_features)
    bound2 = 1.0 / jnp.sqrt(hidden)
    w1 = jax.random.uniform(k1, (in_features, hidden), dtype, -bound1, bound1)
    b1 = jax.random.uniform(k2, (hidden,), dtype, -bound1, bound1)
    w2 = jax.random.uniform(k3, (hidden, in_features), dtype, -bound2, bound2)
    b2 = jax.random.uniform(k4, (in_features,), dtype, -bound2, bound2)
    return w1, b1, w2, b2


if __name__ == "__main__":
    key = jax.random.PRNGKey(0)
    kx, kp = jax.random.split(key)

    # Small ViT-like shapes; N=10 gives M=20 rows, exercising the partial
    # (masked) last row tile (ragged token counts like 197 work the same way).
    B, N, D = 2, 10, 128
    split_ratio = 3              # hidden = 384

    x = jax.random.normal(kx, (B, N, D), dtype=jnp.float32)
    w1, b1, w2, b2 = init_mlp_params(kp, D, split_ratio)

    # Hoisted one-time weight cast (bf16 master copies on the forward path);
    # f32 masters are kept only for the reference checks below.
    w1_c = w1.astype(jnp.bfloat16)
    w2_c = w2.astype(jnp.bfloat16)

    fwd = jax.jit(mlp_pallas)
    out = fwd(x, w1_c, b1, w2_c, b2)
    jax.block_until_ready(out)
    assert out.shape == (B, N, D)

    # 1) Loose check vs the pure-f32 reference (kernel uses bf16 matmul
    #    operands, so tolerance reflects bf16 rounding).
    h_ref = x @ w1 + b1
    h_ref = 0.5 * h_ref * (1.0 + jax.lax.erf(h_ref / jnp.sqrt(2.0)))
    ref_f32 = h_ref @ w2 + b2
    assert jnp.allclose(out, ref_f32, atol=3e-2, rtol=3e-2), (
        "max |err| vs f32 ref = %e" % float(jnp.max(jnp.abs(out - ref_f32))))

    # 2) Tight check vs a reference that uses the same bf16 operands /
    #    f32 accumulation as the kernel.
    xb = x.reshape(-1, D).astype(jnp.bfloat16)
    h_b = jnp.dot(xb, w1_c, preferred_element_type=jnp.float32) + b1
    h_b = 0.5 * h_b * (1.0 + jax.lax.erf(h_b * 0.7071067811865476))
    ref_b = jnp.dot(h_b.astype(jnp.bfloat16), w2_c,
                    preferred_element_type=jnp.float32) + b2
    assert jnp.allclose(out.reshape(-1, D), ref_b, atol=2e-3, rtol=2e-3), (
        "max |err| vs bf16 ref = %e" %
        float(jnp.max(jnp.abs(out.reshape(-1, D) - ref_b))))

    print("KERNEL_OK")
</pallas_src>

<mosaic_0001>
module attributes {stable_mosaic.version = 11 : i64} {
  func.func @_mlp_kernel(%arg0: i32, %arg1: memref<16x128xf32, #tpu.memory_space<vmem>>, %arg2: memref<128x384xbf16, #tpu.memory_space<vmem>>, %arg3: memref<1x384xf32, #tpu.memory_space<vmem>>, %arg4: memref<384x128xbf16, #tpu.memory_space<vmem>>, %arg5: memref<1x128xf32, #tpu.memory_space<vmem>>, %arg6: memref<16x128xf32, #tpu.memory_space<vmem>>) attributes {dimension_semantics = [#tpu.dimension_semantics<parallel>], iteration_bounds = array<i64: 2>, scalar_prefetch = 0 : i64, scratch_operands = 0 : i64, tpu.core_type = #tpu.core_type<tc>, window_params = [{transform_indices = @transform_0, window_bounds = array<i64: 16, 128>}, {pipeline_mode = #tpu.pipeline_mode<synchronous>, transform_indices = @transform_1, window_bounds = array<i64: 128, 384>}, {pipeline_mode = #tpu.pipeline_mode<synchronous>, transform_indices = @transform_2, window_bounds = array<i64: 1, 384>}, {pipeline_mode = #tpu.pipeline_mode<synchronous>, transform_indices = @transform_3, window_bounds = array<i64: 384, 128>}, {pipeline_mode = #tpu.pipeline_mode<synchronous>, transform_indices = @transform_4, window_bounds = array<i64: 1, 128>}, {transform_indices = @transform_5, window_bounds = array<i64: 16, 128>}]} {
    %c0 = arith.constant 0 : index
    %c0_0 = arith.constant 0 : index
    %0 = vector.load %arg1[%c0, %c0_0] : memref<16x128xf32, #tpu.memory_space<vmem>>, vector<16x128xf32>
    %1 = arith.truncf %0 : vector<16x128xf32> to vector<16x128xbf16>
    %cst = arith.constant 0.000000e+00 : f32
    %2 = vector.broadcast %cst : f32 to vector<16x128xf32>
    %c0_1 = arith.constant 0 : index
    %c0_2 = arith.constant 0 : index
    %3 = vector.load %arg2[%c0_1, %c0_2] : memref<128x384xbf16, #tpu.memory_space<vmem>>, vector<128x384xbf16>
    %cst_3 = arith.constant dense<0.000000e+00> : vector<16x384xf32>
    %4 = tpu.matmul %1, %3, %cst_3 {dimension_numbers = #tpu.dot_dimension_numbers<[1], [0], [0], [1], [0, 0, 1, 1], [], []>} : vector<16x128xbf16>, vector<128x384xbf16>, vector<16x384xf32> -> vector<16x384xf32>
    %c0_4 = arith.constant 0 : index
    %c0_5 = arith.constant 0 : index
    %5 = vector.load %arg3[%c0_4, %c0_5] : memref<1x384xf32, #tpu.memory_space<vmem>>, vector<1x384xf32>
    %6 = vector.broadcast %5 : vector<1x384xf32> to vector<16x384xf32>
    %7 = arith.addf %4, %6 : vector<16x384xf32>
    %cst_6 = arith.constant 5.000000e-01 : f32
    %8 = vector.broadcast %cst_6 : f32 to vector<16x384xf32>
    %9 = arith.mulf %8, %7 : vector<16x384xf32>
    %cst_7 = arith.constant 0.707106769 : f32
    %10 = vector.broadcast %cst_7 : f32 to vector<16x384xf32>
    %11 = arith.mulf %7, %10 : vector<16x384xf32>
    %12 = math.erf %11 : vector<16x384xf32>
    %cst_8 = arith.constant 1.000000e+00 : f32
    %13 = vector.broadcast %cst_8 : f32 to vector<16x384xf32>
    %14 = arith.addf %13, %12 : vector<16x384xf32>
    %15 = arith.mulf %9, %14 : vector<16x384xf32>
    %16 = arith.truncf %15 : vector<16x384xf32> to vector<16x384xbf16>
    %c0_9 = arith.constant 0 : index
    %c0_10 = arith.constant 0 : index
    %17 = vector.load %arg4[%c0_9, %c0_10] : memref<384x128xbf16, #tpu.memory_space<vmem>>, vector<384x128xbf16>
    %cst_11 = arith.constant dense<0.000000e+00> : vector<16x128xf32>
    %18 = tpu.matmul %16, %17, %cst_11 {dimension_numbers = #tpu.dot_dimension_numbers<[1], [0], [0], [1], [0, 0, 1, 1], [], []>} : vector<16x384xbf16>, vector<384x128xbf16>, vector<16x128xf32> -> vector<16x128xf32>
    %19 = arith.addf %2, %18 : vector<16x128xf32>
    %c0_12 = arith.constant 0 : index
    %c0_13 = arith.constant 0 : index
    %20 = vector.load %arg5[%c0_12, %c0_13] : memref<1x128xf32, #tpu.memory_space<vmem>>, vector<1x128xf32>
    %21 = vector.broadcast %20 : vector<1x128xf32> to vector<16x128xf32>
    %22 = arith.addf %19, %21 : vector<16x128xf32>
    %c0_14 = arith.constant 0 : index
    %c0_15 = arith.constant 0 : index
    %23 = vector.load %arg6[%c0_14, %c0_15] : memref<16x128xf32, #tpu.memory_space<vmem>>, vector<16x128xf32>
    tpu.vector_store %arg6[%c0_14, %c0_15], %22 {strides = array<i32>} : memref<16x128xf32, #tpu.memory_space<vmem>>, vector<16x128xf32>,
    return
  }
  func.func @transform_0(%arg0: i32) -> (i32, i32) {
    %c0_i32 = arith.constant 0 : i32
    %c0_i32_0 = arith.constant 0 : i32
    return %arg0, %c0_i32 : i32, i32
  }
  func.func @transform_1(%arg0: i32) -> (i32, i32) {
    %c0_i32 = arith.constant 0 : i32
    %c0_i32_0 = arith.constant 0 : i32
    %c0_i32_1 = arith.constant 0 : i32
    return %c0_i32, %c0_i32_0 : i32, i32
  }
  func.func @transform_2(%arg0: i32) -> (i32, i32) {
    %c0_i32 = arith.constant 0 : i32
    %c0_i32_0 = arith.constant 0 : i32
    %c0_i32_1 = arith.constant 0 : i32
    return %c0_i32, %c0_i32_0 : i32, i32
  }
  func.func @transform_3(%arg0: i32) -> (i32, i32) {
    %c0_i32 = arith.constant 0 : i32
    %c0_i32_0 = arith.constant 0 : i32
    %c0_i32_1 = arith.constant 0 : i32
    return %c0_i32, %c0_i32_0 : i32, i32
  }
  func.func @transform_4(%arg0: i32) -> (i32, i32) {
    %c0_i32 = arith.constant 0 : i32
    %c0_i32_0 = arith.constant 0 : i32
    %c0_i32_1 = arith.constant 0 : i32
    return %c0_i32, %c0_i32_0 : i32, i32
  }
  func.func @transform_5(%arg0: i32) -> (i32, i32) {
    %c0_i32 = arith.constant 0 : i32
    %c0_i32_0 = arith.constant 0 : i32
    return %arg0, %c0_i32 : i32, i32
  }
}

</mosaic_0001>

<llo_original>
// kernel: mlp_pallas.1
$region0: #{mlp_pallas.1}
  #allocation0 [shape = 'u32[]', space=smem, size = 0x4, offset = 0x4, fixed_abs, tag = 'smem constant byte address 0x4 - core index']
  #allocation1 [shape = 'u32[144,128]{1,0:T(1,128)}', space=vmem, size = 0x12000, scoped, tag = 'internal scratch']
  %s0 = inlined_call_operand.vmem [shape: f32[20,128], index: 0, kind: input, shape index: {}]
  %s1 = inlined_call_operand.hbm [shape: bf16[128,384], index: 1, kind: input, shape index: {}]
  %s2 = inlined_call_operand.vmem [shape: f32[1,384], index: 2, kind: input, shape index: {}]
  %s3 = inlined_call_operand.hbm [shape: bf16[384,128], index: 3, kind: input, shape index: {}]
  %s4 = inlined_call_operand.vmem [shape: f32[1,128], index: 4, kind: input, shape index: {}]
  %s5 = inlined_call_operand.vmem [shape: f32[20,128], index: 5, kind: output, shape index: {}]
  %s6 = sld [smem:[#allocation0]]
  $region109: #{mlp_pallas.1} parent=0
    _
  %s8 = ssub.s32 1, %s6
  %s9 = scalar_select 0, %s8, %s6
  $region1: #{mlp_pallas.1} parent=0
    #allocation2 [shape = 'u8[98304]{0}', space=vmem, size = 0x18000, scoped, tag = 'input window, operand 1, single buffered']
    #allocation3 [shape = 's32[2]{0}', space=sflag, size = 0x8, scoped, tag = 'scoped memory for mlp_pallas.1']
    #allocation4 [shape = 'u8[98304]{0}', space=vmem, size = 0x18000, scoped, tag = 'input window, operand 3, single buffered']
    #allocation5 [shape = 's32[1]{0}', space=sflag, size = 0x4, scoped, tag = 'scoped memory for mlp_pallas.1']
    #allocation6 [shape = 'u8[16384]{0}', space=vmem, size = 0x4000, scoped, tag = 'output window, operand 0']
    %10 = vsyncpa [#allocation3], 0
    %11 = vsyncpa [#allocation5], 0
    loop: start=0, step=1, limit=4
    $region2: #{mlp_pallas.1} parent=1 // loop_pre_header
      _
    $region3: #{mlp_pallas.1} parent=1 // loop_header
      %s13 = sphi 0, %s17
      %p14 = scmp.ge.s32.totalorder %s13, 4
      %s23 = sphi 0, %s25
      %s26 = sphi 0, %s23
      %s27 = sphi 0, %s26
      %s43 = sphi 0, %s27
      %s47 = sphi 0, %s47
      %s49 = sphi 0, %s47
      %s50 = sphi 0, %s49
      %s64 = sphi 0, %s50
      %s68 = sphi 0, %s68
      %s70 = sphi 0, %s68
      %s71 = sphi 0, %s70
      %s85 = sphi 0, %s71
      %s89 = sphi 0, %s89
      %s91 = sphi 0, %s89
      %s92 = sphi 0, %s91
      %s106 = sphi 0, %s92
      %s110 = sphi 0, %s110
      %s112 = sphi 0, %s110
      %s113 = sphi 0, %s112
      %s127 = sphi 0, %s113
      %s133 = sphi 0, %s135
      %s136 = sphi 0, %s133
      %s137 = sphi 0, %s136
      %s153 = sphi 0, %s137
    $region4: #{mlp_pallas.1} parent=1 // loop_header_branch
      %16 = sbr.rel (%p14) target = $region8
    $region5: #{mlp_pallas.1} parent=1 // loop_body
      %s18 = ssub.s32 %s13, 1
      %s19 = ssub.s32 %s13, 2
      %s20 = sadd.s32 %s13, 1
      %s21 = ssub.s32 %s13, %s20
      %p22 = scmp.eq.s32.totalorder %s21, 0
      %s24 = sadd.s32 %s23, 1
      %s25 = scalar_select %p22, %s23, %s24
      %p28 = pneg %p22
      %p29 = scmp.eq.s32.totalorder %s13, 1
      %p30 = por %p28, %p29
      %p31 = scmp.ne.s32.totalorder %s23, %s26
      %p32 = scmp.eq.s32.totalorder %s13, 0
      %p33 = por %p31, %p32
      %p34 = scmp.ne.s32.totalorder %s23, %s26
      %p35 = scmp.eq.s32.totalorder %s18, 1
      %p36 = por %p34, %p35
      %p37 = scmp.ne.s32.totalorder %s26, %s27
      %p38 = scmp.eq.s32.totalorder %s18, 0
      %p39 = por %p37, %p38
      %p40 = scmp.ne.s32.totalorder %s26, %s27
      %p41 = scmp.eq.s32.totalorder %s19, 1
      %p42 = por %p40, %p41
      %p44 = scmp.ne.s32.totalorder %s27, %s43
      %p45 = scmp.eq.s32.totalorder %s19, 0
      %p46 = por %p44, %p45
      %s48 = sadd.s32 %s47, 1
      %p51 = scmp.eq.s32.totalorder %s13, 1
      %p52 = scmp.ne.s32.totalorder %s47, %s49
      %p53 = scmp.eq.s32.totalorder %s13, 0
      %p54 = por %p52, %p53
      %p55 = scmp.ne.s32.totalorder %s47, %s49
      %p56 = scmp.eq.s32.totalorder %s18, 1
      %p57 = por %p55, %p56
      %p58 = scmp.ne.s32.totalorder %s49, %s50
      %p59 = scmp.eq.s32.totalorder %s18, 0
      %p60 = por %p58, %p59
      %p61 = scmp.ne.s32.totalorder %s49, %s50
      %p62 = scmp.eq.s32.totalorder %s19, 1
      %p63 = por %p61, %p62
      %p65 = scmp.ne.s32.totalorder %s50, %s64
      %p66 = scmp.eq.s32.totalorder %s19, 0
      %p67 = por %p65, %p66
      %s69 = sadd.s32 %s68, 1
      %p72 = scmp.eq.s32.totalorder %s13, 1
      %p73 = scmp.ne.s32.totalorder %s68, %s70
      %p74 = scmp.eq.s32.totalorder %s13, 0
      %p75 = por %p73, %p74
      %p76 = scmp.ne.s32.totalorder %s68, %s70
      %p77 = scmp.eq.s32.totalorder %s18, 1
      %p78 = por %p76, %p77
      %p79 = scmp.ne.s32.totalorder %s70, %s71
      %p80 = scmp.eq.s32.totalorder %s18, 0
      %p81 = por %p79, %p80
      %p82 = scmp.ne.s32.totalorder %s70, %s71
      %p83 = scmp.eq.s32.totalorder %s19, 1
      %p84 = por %p82, %p83
      %p86 = scmp.ne.s32.totalorder %s71, %s85
      %p87 = scmp.eq.s32.totalorder %s19, 0
      %p88 = por %p86, %p87
      %s90 = sadd.s32 %s89, 1
      %p93 = scmp.eq.s32.totalorder %s13, 1
      %p94 = scmp.ne.s32.totalorder %s89, %s91
      %p95 = scmp.eq.s32.totalorder %s13, 0
      %p96 = por %p94, %p95
      %p97 = scmp.ne.s32.totalorder %s89, %s91
      %p98 = scmp.eq.s32.totalorder %s18, 1
      %p99 = por %p97, %p98
      %p100 = scmp.ne.s32.totalorder %s91, %s92
      %p101 = scmp.eq.s32.totalorder %s18, 0
      %p102 = por %p100, %p101
      %p103 = scmp.ne.s32.totalorder %s91, %s92
      %p104 = scmp.eq.s32.totalorder %s19, 1
      %p105 = por %p103, %p104
      %p107 = scmp.ne.s32.totalorder %s92, %s106
      %p108 = scmp.eq.s32.totalorder %s19, 0
      %p109 = por %p107, %p108
      %s111 = sadd.s32 %s110, 1
      %p114 = scmp.eq.s32.totalorder %s13, 1
      %p115 = scmp.ne.s32.totalorder %s110, %s112
      %p116 = scmp.eq.s32.totalorder %s13, 0
      %p117 = por %p115, %p116
      %p118 = scmp.ne.s32.totalorder %s110, %s112
      %p119 = scmp.eq.s32.totalorder %s18, 1
      %p120 = por %p118, %p119
      %p121 = scmp.ne.s32.totalorder %s112, %s113
      %p122 = scmp.eq.s32.totalorder %s18, 0
      %p123 = por %p121, %p122
      %p124 = scmp.ne.s32.totalorder %s112, %s113
      %p125 = scmp.eq.s32.totalorder %s19, 1
      %p126 = por %p124, %p125
      %p128 = scmp.ne.s32.totalorder %s113, %s127
      %p129 = scmp.eq.s32.totalorder %s19, 0
      %p130 = por %p128, %p129
      %s131 = ssub.s32 %s13, %s20
      %p132 = scmp.eq.s32.totalorder %s131, 0
      %s134 = sadd.s32 %s133, 1
      %s135 = scalar_select %p132, %s133, %s134
      %p138 = pneg %p132
      %p139 = scmp.eq.s32.totalorder %s13, 1
      %p140 = por %p138, %p139
      %p141 = scmp.ne.s32.totalorder %s133, %s136
      %p142 = scmp.eq.s32.totalorder %s13, 0
      %p143 = por %p141, %p142
      %p144 = scmp.ne.s32.totalorder %s133, %s136
      %p145 = scmp.eq.s32.totalorder %s18, 1
      %p146 = por %p144, %p145
      %p147 = scmp.ne.s32.totalorder %s136, %s137
      %p148 = scmp.eq.s32.totalorder %s18, 0
      %p149 = por %p147, %p148
      %p150 = scmp.ne.s32.totalorder %s136, %s137
      %p151 = scmp.eq.s32.totalorder %s19, 1
      %p152 = por %p150, %p151
      %p154 = scmp.ne.s32.totalorder %s137, %s153
      %p155 = scmp.eq.s32.totalorder %s19, 0
      %p156 = por %p154, %p155
      %p157 = scmp.le.s32.totalorder 1, %s13
      %p158 = scmp.lt.s32.totalorder %s13, 3
      %p159 = pnand %p157, %p158
      %p160 = pneg %p159
      // Predicated region
      $region9: #{mlp_pallas.1} parent=5 // pred_check
        _
      $region10: #{mlp_pallas.1} parent=5 // pred_check_branch
        %162 = sbr.rel (%p159) target = $region12
      $region11: #{mlp_pallas.1} parent=5 // pred_region
        %s163 = ssub.s32 %s13, 1
        // Predicated region
        $region13: #{mlp_pallas.1} parent=11 // pred_check
          %p164 = pneg %p60
        $region14: #{mlp_pallas.1} parent=11 // pred_check_branch
          %166 = sbr.rel (%p164) target = $region16
        $region15: #{mlp_pallas.1} parent=11 // pred_region
          %s168 = ssub.s32 3072, 3072
          %169 = vsyncadd [#allocation3], %s168
          %s170 = sshll.u32 [#allocation2], 4
          %s171 = int_to_ptr.vmem [resolvable:$true] %s170
          %176 = dma.hbm_to_vmem [thread:$0]  %s1, 3072, %s171, [#allocation3], 192, 192, 12
        $region16: #{mlp_pallas.1} parent=11 // pred_fallthru
          _
        // Predicated region
        $region17: #{mlp_pallas.1} parent=11 // pred_check
          %p177 = pneg %p81
        $region18: #{mlp_pallas.1} parent=11 // pred_check_branch
          %179 = sbr.rel (%p177) target = $region20
        $region19: #{mlp_pallas.1} parent=11 // pred_region
          _
        $region20: #{mlp_pallas.1} parent=11 // pred_fallthru
          _
        // Predicated region
        $region21: #{mlp_pallas.1} parent=11 // pred_check
          %p180 = pneg %p102
        $region22: #{mlp_pallas.1} parent=11 // pred_check_branch
          %182 = sbr.rel (%p180) target = $region24
        $region23: #{mlp_pallas.1} parent=11 // pred_region
          %s184 = ssub.s32 3072, 3072
          %185 = vsyncadd [#allocation5], %s184
          %s186 = sshll.u32 [#allocation4], 4
          %s187 = int_to_ptr.vmem [resolvable:$true] %s186
          %192 = dma.hbm_to_vmem [thread:$0]  %s3, 3072, %s187, [#allocation5], 64, 64, 4
        $region24: #{mlp_pallas.1} parent=11 // pred_fallthru
          _
        // Predicated region
        $region25: #{mlp_pallas.1} parent=11 // pred_check
          %p193 = pneg %p123
        $region26: #{mlp_pallas.1} parent=11 // pred_check_branch
          %195 = sbr.rel (%p193) target = $region28
        $region27: #{mlp_pallas.1} parent=11 // pred_region
          _
        $region28: #{mlp_pallas.1} parent=11 // pred_fallthru
          _
      $region12: #{mlp_pallas.1} parent=5 // pred_fallthru
        _
      %p196 = scmp.lt.s32.totalorder %s13, 2
      // Predicated region
      $region29: #{mlp_pallas.1} parent=5 // pred_check
        %p197 = pneg %p196
      $region30: #{mlp_pallas.1} parent=5 // pred_check_branch
        %199 = sbr.rel (%p197) target = $region32
      $region31: #{mlp_pallas.1} parent=5 // pred_region
        // Predicated region
        $region33: #{mlp_pallas.1} parent=31 // pred_check
          %p200 = pneg %p33
        $region34: #{mlp_pallas.1} parent=31 // pred_check_branch
          %202 = sbr.rel (%p200) target = $region36
        $region35: #{mlp_pallas.1} parent=31 // pred_region
          %s203 = smul.u32 2, %s13
          %s204 = ssub.s32 3, %s203
          %p205 = scmp.lt.s32.totalorder %s204, 2
          %s206 = scalar_select %p205, %s204, 2
          %s207 = smul.u32 128, %s206
          %p208 = scmp.lt.s32.totalorder %s203, 2
          %s209 = scalar_select %p208, %s203, 2
          %s210 = smul.addr %s209, 8
          %s211 = scalar_lea.vmem %s0, %s210
          %s212 = smul.u32 2, %s13
          %s213 = ssub.s32 3, %s212
          %p214 = scmp.lt.s32.totalorder %s213, 2
          %s215 = scalar_select %p214, %s213, 2
          %s216 = smul.u32 128, %s215
        $region36: #{mlp_pallas.1} parent=31 // pred_fallthru
          _
      $region32: #{mlp_pallas.1} parent=5 // pred_fallthru
        _
      %p217 = scmp.le.s32.totalorder 1, %s13
      %p218 = scmp.lt.s32.totalorder %s13, 3
      %p219 = pnand %p217, %p218
      %p220 = pneg %p219
      // Predicated region
      $region37: #{mlp_pallas.1} parent=5 // pred_check
        _
      $region38: #{mlp_pallas.1} parent=5 // pred_check_branch
        %222 = sbr.rel (%p219) target = $region40
      $region39: #{mlp_pallas.1} parent=5 // pred_region
        %s223 = ssub.s32 %s13, 1
        // Predicated region
        $region41: #{mlp_pallas.1} parent=39 // pred_check
          %p224 = pneg %p60
        $region42: #{mlp_pallas.1} parent=39 // pred_check_branch
          %226 = sbr.rel (%p224) target = $region44
        $region43: #{mlp_pallas.1} parent=39 // pred_region
          %227 = dma.done [#allocation3], 3072
        $region44: #{mlp_pallas.1} parent=39 // pred_fallthru
          _
        // Predicated region
        $region45: #{mlp_pallas.1} parent=39 // pred_check
          %p228 = pneg %p102
        $region46: #{mlp_pallas.1} parent=39 // pred_check_branch
          %230 = sbr.rel (%p228) target = $region48
        $region47: #{mlp_pallas.1} parent=39 // pred_region
          %231 = dma.done [#allocation5], 3072
        $region48: #{mlp_pallas.1} parent=39 // pred_fallthru
          _
        %s232 = smul.u32 2, %s18
        %s233 = ssub.s32 3, %s232
        %p234 = scmp.lt.s32.totalorder %s233, 2
        %s235 = scalar_select %p234, %s233, 2
        %s236 = smul.u32 128, %s235
        %p237 = scmp.lt.s32.totalorder %s232, 2
        %s238 = scalar_select %p237, %s232, 2
        %s239 = smul.addr %s238, 8
        %s240 = scalar_lea.vmem %s0, %s239
        %p241 = pneg %p39
        %p242 = pneg %p36
        %p243 = pneg %p60
        %p244 = pneg %p57
        %p245 = pneg %p81
        %p246 = pneg %p78
        %p247 = pneg %p102
        %p248 = pneg %p99
        %p249 = pneg %p123
        %p250 = pneg %p120
        %p251 = pneg %p149
        %p252 = pneg %p146
        %s253 = sand.u32 %s136, 1
        %s254 = sand.u32 %s136, 1
        %s255 = smul.addr %s254, 16
        %s256 = scalar_lea.vmem [#allocation6], %s255
        %s257 = smul.u32 2, %s18
        %s258 = ssub.s32 3, %s257
        %p259 = scmp.lt.s32.totalorder %s258, 2
        %s260 = scalar_select %p259, %s258, 2
        %s261 = smul.u32 128, %s260
        %p262 = scmp.lt.s32.totalorder %s257, 2
        %s263 = scalar_select %p262, %s257, 2
        %s264 = smul.addr %s263, 8
        %s265 = scalar_lea.vmem %s0, %s264
        %s266 = smul.u32 2, %s18
        %s267 = ssub.s32 3, %s266
        %p268 = scmp.lt.s32.totalorder %s267, 2
        %s269 = scalar_select %p268, %s267, 2
        %s270 = smul.u32 128, %s269
        %s271 = smul.u32 2, %s18
        %s272 = ssub.s32 3, %s271
        %p273 = scmp.lt.s32.totalorder %s272, 2
        %s274 = scalar_select %p273, %s272, 2
        %s275 = smul.u32 128, %s274
        %v277 = vld [vmem:[%s265] sm:$0xff]
        %v278 = vld [vmem:[%s265 + $0x8] sm:$0xff]
        %v279 = vpack.c.bf16 %v278, %v277
        %v280 = vld [vmem:[#allocation2] sm:$0xff]
        %v281 = vld [vmem:[#allocation2 + $0x8] sm:$0xf]
        %v282 = vld [vmem:[#allocation2 + $0xc] sm:$0xff]
        %v283 = vld [vmem:[#allocation2 + $0x14] sm:$0xf]
        %v284 = vld [vmem:[#allocation2 + $0x18] sm:$0xff]
        %v285 = vld [vmem:[#allocation2 + $0x20] sm:$0xf]
        %v286 = vld [vmem:[#allocation2 + $0x24] sm:$0xff]
        %v287 = vld [vmem:[#allocation2 + $0x2c] sm:$0xf]
        %v288 = vld [vmem:[#allocation2 + $0x30] sm:$0xff]
        %v289 = vld [vmem:[#allocation2 + $0x38] sm:$0xf]
        %v290 = vld [vmem:[#allocation2 + $0x3c] sm:$0xff]
        %v291 = vld [vmem:[#allocation2 + $0x44] sm:$0xf]
        %v292 = vld [vmem:[#allocation2 + $0x48] sm:$0xff]
        %v293 = vld [vmem:[#allocation2 + $0x50] sm:$0xf]
        %v294 = vld [vmem:[#allocation2 + $0x54] sm:$0xff]
        %v295 = vld [vmem:[#allocation2 + $0x5c] sm:$0xf]
        %v296 = vld [vmem:[#allocation2 + $0x60] sm:$0xff]
        %v297 = vld [vmem:[#allocation2 + $0x68] sm:$0xf]
        %v298 = vld [vmem:[#allocation2 + $0x6c] sm:$0xff]
        %v299 = vld [vmem:[#allocation2 + $0x74] sm:$0xf]
        %v300 = vld [vmem:[#allocation2 + $0x78] sm:$0xff]
        %v301 = vld [vmem:[#allocation2 + $0x80] sm:$0xf]
        %v302 = vld [vmem:[#allocation2 + $0x84] sm:$0xff]
        %v303 = vld [vmem:[#allocation2 + $0x8c] sm:$0xf]
        %v304 = vld [vmem:[#allocation2 + $0x90] sm:$0xff]
        %v305 = vld [vmem:[#allocation2 + $0x98] sm:$0xf]
        %v306 = vld [vmem:[#allocation2 + $0x9c] sm:$0xff]
        %v307 = vld [vmem:[#allocation2 + $0xa4] sm:$0xf]
        %v308 = vld [vmem:[#allocation2 + $0xa8] sm:$0xff]
        %v309 = vld [vmem:[#allocation2 + $0xb0] sm:$0xf]
        %v310 = vld [vmem:[#allocation2 + $0xb4] sm:$0xff]
        %v311 = vld [vmem:[#allocation2 + $0xbc] sm:$0xf]
        %v312 = vld [vmem:[%s2] sm:$0x7]
        %v314 = vlaneseq
        %v315 = vshrl.u32 %v314, 7
        %v316 = vsub.s32 0, %v315
        %v317 = vrot.slane %v312, %v316
        %v318 = vlaneseq
        %v319 = vshrl.u32 %v318, 7
        %v320 = vsub.s32 1, %v319
        %v321 = vrot.slane %v312, %v320
        %v322 = vlaneseq
        %v323 = vshrl.u32 %v322, 7
        %v324 = vsub.s32 2, %v323
        %v325 = vrot.slane %v312, %v324
        %v361 = vunpack.c.l.b16 %v280
        %v362 = vunpack.c.h.b16 %v280
        %v363 = vunpack.c.l.b16 %v281
        %v364 = vunpack.c.l.b16 %v282
        %v365 = vunpack.c.h.b16 %v282
        %v366 = vunpack.c.l.b16 %v283
        %v367 = vunpack.c.l.b16 %v284
        %v368 = vunpack.c.h.b16 %v284
        %v369 = vunpack.c.l.b16 %v285
        %v370 = vunpack.c.l.b16 %v286
        %v371 = vunpack.c.h.b16 %v286
        %v372 = vunpack.c.l.b16 %v287
        %v373 = vunpack.c.l.b16 %v288
        %v374 = vunpack.c.h.b16 %v288
        %v375 = vunpack.c.l.b16 %v289
        %v376 = vunpack.c.l.b16 %v290
        %v377 = vunpack.c.h.b16 %v290
        %v378 = vunpack.c.l.b16 %v291
        %v379 = vunpack.c.l.b16 %v292
        %v380 = vunpack.c.h.b16 %v292
        %v381 = vunpack.c.l.b16 %v293
        %v382 = vunpack.c.l.b16 %v294
        %v383 = vunpack.c.h.b16 %v294
        %v384 = vunpack.c.l.b16 %v295
        %v385 = vunpack.c.l.b16 %v296
        %v386 = vunpack.c.h.b16 %v296
        %v387 = vunpack.c.l.b16 %v297
        %v388 = vunpack.c.l.b16 %v298
        %v389 = vunpack.c.h.b16 %v298
        %v390 = vunpack.c.l.b16 %v299
        %v391 = vunpack.c.l.b16 %v300
        %v392 = vunpack.c.h.b16 %v300
        %v393 = vunpack.c.l.b16 %v301
        %v394 = vunpack.c.l.b16 %v302
        %v395 = vunpack.c.h.b16 %v302
        %v396 = vunpack.c.l.b16 %v303
        %v397 = vunpack.c.l.b16 %v304
        %v398 = vunpack.c.h.b16 %v304
        %v399 = vunpack.c.l.b16 %v305
        %v400 = vunpack.c.l.b16 %v306
        %v401 = vunpack.c.h.b16 %v306
        %v402 = vunpack.c.l.b16 %v307
        %v403 = vunpack.c.l.b16 %v308
        %v404 = vunpack.c.h.b16 %v308
        %v405 = vunpack.c.l.b16 %v309
        %v406 = vunpack.c.l.b16 %v310
        %v407 = vunpack.c.h.b16 %v310
        %v408 = vunpack.c.l.b16 %v311
        %v409 = vpack.c.b16 %v364, %v361
        %v410 = vpack.c.b16 %v365, %v362
        %v411 = vpack.c.b16 %v366, %v363
        %v412 = vpack.c.b16 %v370, %v367
        %v413 = vpack.c.b16 %v371, %v368
        %v414 = vpack.c.b16 %v372, %v369
        %v415 = vpack.c.b16 %v376, %v373
        %v416 = vpack.c.b16 %v377, %v374
        %v417 = vpack.c.b16 %v378, %v375
        %v418 = vpack.c.b16 %v382, %v379
        %v419 = vpack.c.b16 %v383, %v380
        %v420 = vpack.c.b16 %v384, %v381
        %v421 = vpack.c.b16 %v388, %v385
        %v422 = vpack.c.b16 %v389, %v386
        %v423 = vpack.c.b16 %v390, %v387
        %v424 = vpack.c.b16 %v394, %v391
        %v425 = vpack.c.b16 %v395, %v392
        %v426 = vpack.c.b16 %v396, %v393
        %v427 = vpack.c.b16 %v400, %v397
        %v428 = vpack.c.b16 %v401, %v398
        %v429 = vpack.c.b16 %v402, %v399
        %v430 = vpack.c.b16 %v406, %v403
        %v431 = vpack.c.b16 %v407, %v404
        %v432 = vpack.c.b16 %v408, %v405
        %457 = vmatprep.subr.bf16.mxu0 %v410
        %458 = vmatpush1.bf16.msra.mxu0 %v409
        %459 = vmatprep.subr.bf16.mxu0 %v413
        %460 = vmatpush1.bf16.msra.mxu0 %v412
        %461 = vmatprep.subr.bf16.mxu0 %v416
        %462 = vmatpush1.bf16.msra.mxu0 %v415
        %463 = vmatprep.subr.bf16.mxu0 %v419
        %464 = vmatpush1.bf16.msra.mxu0 %v418
        %465 = vmatprep.subr.bf16.mxu0 %v422
        %466 = vmatpush1.bf16.msra.mxu0 %v421
        %467 = vmatprep.subr.bf16.mxu0 %v425
        %468 = vmatpush1.bf16.msra.mxu0 %v424
        %469 = vmatprep.subr.bf16.mxu0 %v428
        %470 = vmatpush1.bf16.msra.mxu0 %v427
        %471 = vmatprep.subr.bf16.mxu0 %v431
        %472 = vmatpush1.bf16.msra.mxu0 %v430
        %473 = vmatprep.subr.bf16.mxu0 0
        %474 = vmatpush1.bf16.msra.mxu0 0
        %475 = vmatprep.subr.bf16.mxu0 0
        %476 = vmatpush1.bf16.msra.mxu0 0
        %477 = vmatprep.subr.bf16.mxu0 0
        %478 = vmatpush1.bf16.msra.mxu0 0
        %479 = vmatprep.subr.bf16.mxu0 0
        %480 = vmatpush1.bf16.msra.mxu0 0
        %481 = vmatprep.subr.bf16.mxu0 0
        %482 = vmatpush1.bf16.msra.mxu0 0
        %483 = vmatprep.subr.bf16.mxu0 0
        %484 = vmatpush1.bf16.msra.mxu0 0
        %485 = vmatprep.subr.bf16.mxu0 0
        %486 = vmatpush1.bf16.msra.mxu0 0
        %487 = vmatprep.subr.bf16.mxu0 0
        %488 = vmatpush1.bf16.msra.mxu0 0
        %489 = vmatprep.mubr.bf16.mxu0 0
        %490 = vmatmul.mubr.bf16.gmra.mrb[0].mxu0 %v279
        %v491 = vpop.f32.mrb[0].mxu0
        %v492 = vadd.f32 %v317, %v491
        %v493 = vpop.f32.mrb[0].mxu0
        %v494 = vadd.f32 %v321, %v493
        %v495 = vpop.f32.mrb[0].mxu0
        %v496 = vadd.f32 %v317, %v495
        %v497 = vpop.f32.mrb[0].mxu0
        %v498 = vadd.f32 %v321, %v497
        %499 = vdwg.mxu0
        %500 = vmatprep.subr.bf16.mxu0 0
        %501 = vmatpush1.bf16.msra.mxu0 %v411
        %502 = vmatprep.subr.bf16.mxu0 0
        %503 = vmatpush1.bf16.msra.mxu0 %v414
        %504 = vmatprep.subr.bf16.mxu0 0
        %505 = vmatpush1.bf16.msra.mxu0 %v417
        %506 = vmatprep.subr.bf16.mxu0 0
        %507 = vmatpush1.bf16.msra.mxu0 %v420
        %508 = vmatprep.subr.bf16.mxu0 0
        %509 = vmatpush1.bf16.msra.mxu0 %v423
        %510 = vmatprep.subr.bf16.mxu0 0
        %511 = vmatpush1.bf16.msra.mxu0 %v426
        %512 = vmatprep.subr.bf16.mxu0 0
        %513 = vmatpush1.bf16.msra.mxu0 %v429
        %514 = vmatprep.subr.bf16.mxu0 0
        %515 = vmatpush1.bf16.msra.mxu0 %v432
        %516 = vmatprep.subr.bf16.mxu0 0
        %517 = vmatpush1.bf16.msra.mxu0 0
        %518 = vmatprep.subr.bf16.mxu0 0
        %519 = vmatpush1.bf16.msra.mxu0 0
        %520 = vmatprep.subr.bf16.mxu0 0
        %521 = vmatpush1.bf16.msra.mxu0 0
        %522 = vmatprep.subr.bf16.mxu0 0
        %523 = vmatpush1.bf16.msra.mxu0 0
        %524 = vmatprep.subr.bf16.mxu0 0
        %525 = vmatpush1.bf16.msra.mxu0 0
        %526 = vmatprep.subr.bf16.mxu0 0
        %527 = vmatpush1.bf16.msra.mxu0 0
        %528 = vmatprep.subr.bf16.mxu0 0
        %529 = vmatpush1.bf16.msra.mxu0 0
        %530 = vmatprep.subr.bf16.mxu0 0
        %531 = vmatpush1.bf16.msra.mxu0 0
        %532 = vmatprep.mubr.bf16.mxu0 0
        %533 = vmatmul.mubr.bf16.gmra.mrb[0].mxu0 %v279
        %v534 = vpop.f32.mrb[0].mxu0
        %v535 = vadd.f32 %v325, %v534
        %v536 = vpop.f32.mrb[0].mxu0
        %v537 = vpop.f32.mrb[0].mxu0
        %v538 = vadd.f32 %v325, %v537
        %v539 = vpop.f32.mrb[0].mxu0
        %540 = vdwg.mxu0
        %v541 = vmul.f32 %v492, 0.5
        %v542 = vmul.f32 %v494, 0.5
        %v543 = vmul.f32 %v535, 0.5
        %v544 = vmul.f32 %v496, 0.5
        %v545 = vmul.f32 %v498, 0.5
        %v546 = vmul.f32 %v538, 0.5
        %v547 = vmul.f32 %v492, 0.70710677
        %v548 = vmul.f32 %v494, 0.70710677
        %v549 = vmul.f32 %v535, 0.70710677
        %v550 = vmul.f32 %v496, 0.70710677
        %v551 = vmul.f32 %v498, 0.70710677
        %v552 = vmul.f32 %v538, 0.70710677
        %v553 = verf.f32.pop %v547
        %v554 = verf.f32.pop %v548
        %v555 = verf.f32.pop %v549
        %v556 = verf.f32.pop %v550
        %v557 = verf.f32.pop %v551
        %v558 = verf.f32.pop %v552
        %v559 = vadd.f32 %v553, 1.0
        %v560 = vadd.f32 %v554, 1.0
        %v561 = vadd.f32 %v555, 1.0
        %v562 = vadd.f32 %v556, 1.0
        %v563 = vadd.f32 %v557, 1.0
        %v564 = vadd.f32 %v558, 1.0
        %v565 = vmul.f32 %v541, %v559
        %v566 = vmul.f32 %v542, %v560
        %v567 = vmul.f32 %v543, %v561
        %v568 = vmul.f32 %v544, %v562
        %v569 = vmul.f32 %v545, %v563
        %v570 = vmul.f32 %v546, %v564
        %v571 = vpack.c.bf16 %v568, %v565
        %v572 = vpack.c.bf16 %v569, %v566
        %v573 = vpack.c.bf16 %v570, %v567
        %v574 = vld [vmem:[#allocation4] sm:$0xf]
        %v575 = vld [vmem:[#allocation4 + $0x4] sm:$0xf]
        %v576 = vld [vmem:[#allocation4 + $0x8] sm:$0xf]
        %v577 = vld [vmem:[#allocation4 + $0xc] sm:$0xf]
        %v578 = vld [vmem:[#allocation4 + $0x10] sm:$0xf]
        %v579 = vld [vmem:[#allocation4 + $0x14] sm:$0xf]
        %v580 = vld [vmem:[#allocation4 + $0x18] sm:$0xf]
        %v581 = vld [vmem:[#allocation4 + $0x1c] sm:$0xf]
        %v582 = vld [vmem:[#allocation4 + $0x20] sm:$0xf]
        %v583 = vld [vmem:[#allocation4 + $0x24] sm:$0xf]
        %v584 = vld [vmem:[#allocation4 + $0x28] sm:$0xf]
        %v585 = vld [vmem:[#allocation4 + $0x2c] sm:$0xf]
        %v586 = vld [vmem:[#allocation4 + $0x30] sm:$0xf]
        %v587 = vld [vmem:[#allocation4 + $0x34] sm:$0xf]
        %v588 = vld [vmem:[#allocation4 + $0x38] sm:$0xf]
        %v589 = vld [vmem:[#allocation4 + $0x3c] sm:$0xf]
        %v590 = vld [vmem:[#allocation4 + $0x40] sm:$0xf]
        %v591 = vld [vmem:[#allocation4 + $0x44] sm:$0xf]
        %v592 = vld [vmem:[#allocation4 + $0x48] sm:$0xf]
        %v593 = vld [vmem:[#allocation4 + $0x4c] sm:$0xf]
        %v594 = vld [vmem:[#allocation4 + $0x50] sm:$0xf]
        %v595 = vld [vmem:[#allocation4 + $0x54] sm:$0xf]
        %v596 = vld [vmem:[#allocation4 + $0x58] sm:$0xf]
        %v597 = vld [vmem:[#allocation4 + $0x5c] sm:$0xf]
        %v598 = vld [vmem:[#allocation4 + $0x60] sm:$0xf]
        %v599 = vld [vmem:[#allocation4 + $0x64] sm:$0xf]
        %v600 = vld [vmem:[#allocation4 + $0x68] sm:$0xf]
        %v601 = vld [vmem:[#allocation4 + $0x6c] sm:$0xf]
        %v602 = vld [vmem:[#allocation4 + $0x70] sm:$0xf]
        %v603 = vld [vmem:[#allocation4 + $0x74] sm:$0xf]
        %v604 = vld [vmem:[#allocation4 + $0x78] sm:$0xf]
        %v605 = vld [vmem:[#allocation4 + $0x7c] sm:$0xf]
        %v606 = vld [vmem:[#allocation4 + $0x80] sm:$0xf]
        %v607 = vld [vmem:[#allocation4 + $0x84] sm:$0xf]
        %v608 = vld [vmem:[#allocation4 + $0x88] sm:$0xf]
        %v609 = vld [vmem:[#allocation4 + $0x8c] sm:$0xf]
        %v610 = vld [vmem:[#allocation4 + $0x90] sm:$0xf]
        %v611 = vld [vmem:[#allocation4 + $0x94] sm:$0xf]
        %v612 = vld [vmem:[#allocation4 + $0x98] sm:$0xf]
        %v613 = vld [vmem:[#allocation4 + $0x9c] sm:$0xf]
        %v614 = vld [vmem:[#allocation4 + $0xa0] sm:$0xf]
        %v615 = vld [vmem:[#allocation4 + $0xa4] sm:$0xf]
        %v616 = vld [vmem:[#allocation4 + $0xa8] sm:$0xf]
        %v617 = vld [vmem:[#allocation4 + $0xac] sm:$0xf]
        %v618 = vld [vmem:[#allocation4 + $0xb0] sm:$0xf]
        %v619 = vld [vmem:[#allocation4 + $0xb4] sm:$0xf]
        %v620 = vld [vmem:[#allocation4 + $0xb8] sm:$0xf]
        %v621 = vld [vmem:[#allocation4 + $0xbc] sm:$0xf]
        %v622 = vld [vmem:[%s4] sm:$0x1]
        %v624 = vlaneseq
        %v625 = vshrl.u32 %v624, 7
        %v626 = vsub.s32 0, %v625
        %v627 = vrot.slane %v622, %v626
        %v677 = vunpack.c.l.b16 %v574
        %v678 = vunpack.c.l.b16 %v575
        %v679 = vunpack.c.l.b16 %v576
        %v680 = vunpack.c.l.b16 %v577
        %v681 = vunpack.c.l.b16 %v578
        %v682 = vunpack.c.l.b16 %v579
        %v683 = vunpack.c.l.b16 %v580
        %v684 = vunpack.c.l.b16 %v581
        %v685 = vunpack.c.l.b16 %v582
        %v686 = vunpack.c.l.b16 %v583
        %v687 = vunpack.c.l.b16 %v584
        %v688 = vunpack.c.l.b16 %v585
        %v689 = vunpack.c.l.b16 %v586
        %v690 = vunpack.c.l.b16 %v587
        %v691 = vunpack.c.l.b16 %v588
        %v692 = vunpack.c.l.b16 %v589
        %v693 = vunpack.c.l.b16 %v590
        %v694 = vunpack.c.l.b16 %v591
        %v695 = vunpack.c.l.b16 %v592
        %v696 = vunpack.c.l.b16 %v593
        %v697 = vunpack.c.l.b16 %v594
        %v698 = vunpack.c.l.b16 %v595
        %v699 = vunpack.c.l.b16 %v596
        %v700 = vunpack.c.l.b16 %v597
        %v701 = vunpack.c.l.b16 %v598
        %v702 = vunpack.c.l.b16 %v599
        %v703 = vunpack.c.l.b16 %v600
        %v704 = vunpack.c.l.b16 %v601
        %v705 = vunpack.c.l.b16 %v602
        %v706 = vunpack.c.l.b16 %v603
        %v707 = vunpack.c.l.b16 %v604
        %v708 = vunpack.c.l.b16 %v605
        %v709 = vunpack.c.l.b16 %v606
        %v710 = vunpack.c.l.b16 %v607
        %v711 = vunpack.c.l.b16 %v608
        %v712 = vunpack.c.l.b16 %v609
        %v713 = vunpack.c.l.b16 %v610
        %v714 = vunpack.c.l.b16 %v611
        %v715 = vunpack.c.l.b16 %v612
        %v716 = vunpack.c.l.b16 %v613
        %v717 = vunpack.c.l.b16 %v614
        %v718 = vunpack.c.l.b16 %v615
        %v719 = vunpack.c.l.b16 %v616
        %v720 = vunpack.c.l.b16 %v617
        %v721 = vunpack.c.l.b16 %v618
        %v722 = vunpack.c.l.b16 %v619
        %v723 = vunpack.c.l.b16 %v620
        %v724 = vunpack.c.l.b16 %v621
        %v725 = vpack.c.b16 %v678, %v677
        %v726 = vpack.c.b16 %v680, %v679
        %v727 = vpack.c.b16 %v682, %v681
        %v728 = vpack.c.b16 %v684, %v683
        %v729 = vpack.c.b16 %v686, %v685
        %v730 = vpack.c.b16 %v688, %v687
        %v731 = vpack.c.b16 %v690, %v689
        %v732 = vpack.c.b16 %v692, %v691
        %v733 = vpack.c.b16 %v694, %v693
        %v734 = vpack.c.b16 %v696, %v695
        %v735 = vpack.c.b16 %v698, %v697
        %v736 = vpack.c.b16 %v700, %v699
        %v737 = vpack.c.b16 %v702, %v701
        %v738 = vpack.c.b16 %v704, %v703
        %v739 = vpack.c.b16 %v706, %v705
        %v740 = vpack.c.b16 %v708, %v707
        %v741 = vpack.c.b16 %v710, %v709
        %v742 = vpack.c.b16 %v712, %v711
        %v743 = vpack.c.b16 %v714, %v713
        %v744 = vpack.c.b16 %v716, %v715
        %v745 = vpack.c.b16 %v718, %v717
        %v746 = vpack.c.b16 %v720, %v719
        %v747 = vpack.c.b16 %v722, %v721
        %v748 = vpack.c.b16 %v724, %v723
        %773 = vmatprep.subr.bf16.mxu0 0
        %774 = vmatpush1.bf16.msra.mxu0 %v725
        %775 = vmatprep.subr.bf16.mxu0 0
        %776 = vmatpush1.bf16.msra.mxu0 %v726
        %777 = vmatprep.subr.bf16.mxu0 0
        %778 = vmatpush1.bf16.msra.mxu0 %v727
        %779 = vmatprep.subr.bf16.mxu0 0
        %780 = vmatpush1.bf16.msra.mxu0 %v728
        %781 = vmatprep.subr.bf16.mxu0 0
        %782 = vmatpush1.bf16.msra.mxu0 %v729
        %783 = vmatprep.subr.bf16.mxu0 0
        %784 = vmatpush1.bf16.msra.mxu0 %v730
        %785 = vmatprep.subr.bf16.mxu0 0
        %786 = vmatpush1.bf16.msra.mxu0 %v731
        %787 = vmatprep.subr.bf16.mxu0 0
        %788 = vmatpush1.bf16.msra.mxu0 %v732
        %789 = vmatprep.subr.bf16.mxu0 0
        %790 = vmatpush1.bf16.msra.mxu0 %v733
        %791 = vmatprep.subr.bf16.mxu0 0
        %792 = vmatpush1.bf16.msra.mxu0 %v734
        %793 = vmatprep.subr.bf16.mxu0 0
        %794 = vmatpush1.bf16.msra.mxu0 %v735
        %795 = vmatprep.subr.bf16.mxu0 0
        %796 = vmatpush1.bf16.msra.mxu0 %v736
        %797 = vmatprep.subr.bf16.mxu0 0
        %798 = vmatpush1.bf16.msra.mxu0 %v737
        %799 = vmatprep.subr.bf16.mxu0 0
        %800 = vmatpush1.bf16.msra.mxu0 %v738
        %801 = vmatprep.subr.bf16.mxu0 0
        %802 = vmatpush1.bf16.msra.mxu0 %v739
        %803 = vmatprep.subr.bf16.mxu0 0
        %804 = vmatpush1.bf16.msra.mxu0 %v740
        %805 = vmatprep.mubr.bf16.mxu0 %v572
        %806 = vmatmul.mubr.bf16.gmra.mrb[0].mxu0 %v571
        %v807 = vpop.f32.mrb[0].mxu0
        %v808 = vadd.f32 %v627, %v807
        %v809 = vpop.f32.mrb[0].mxu0
        %v810 = vpop.f32.mrb[0].mxu0
        %v811 = vadd.f32 %v627, %v810
        %v812 = vpop.f32.mrb[0].mxu0
        %813 = vdwg.mxu0
        %814 = vmatprep.subr.bf16.mxu0 0
        %815 = vmatpush1.bf16.msra.mxu0 %v741
        %816 = vmatprep.subr.bf16.mxu0 0
        %817 = vmatpush1.bf16.msra.mxu0 %v742
        %818 = vmatprep.subr.bf16.mxu0 0
        %819 = vmatpush1.bf16.msra.mxu0 %v743
        %820 = vmatprep.subr.bf16.mxu0 0
        %821 = vmatpush1.bf16.msra.mxu0 %v744
        %822 = vmatprep.subr.bf16.mxu0 0
        %823 = vmatpush1.bf16.msra.mxu0 %v745
        %824 = vmatprep.subr.bf16.mxu0 0
        %825 = vmatpush1.bf16.msra.mxu0 %v746
        %826 = vmatprep.subr.bf16.mxu0 0
        %827 = vmatpush1.bf16.msra.mxu0 %v747
        %828 = vmatprep.subr.bf16.mxu0 0
        %829 = vmatpush1.bf16.msra.mxu0 %v748
        %830 = vmatprep.subr.bf16.mxu0 0
        %831 = vmatpush1.bf16.msra.mxu0 0
        %832 = vmatprep.subr.bf16.mxu0 0
        %833 = vmatpush1.bf16.msra.mxu0 0
        %834 = vmatprep.subr.bf16.mxu0 0
        %835 = vmatpush1.bf16.msra.mxu0 0
        %836 = vmatprep.subr.bf16.mxu0 0
        %837 = vmatpush1.bf16.msra.mxu0 0
        %838 = vmatprep.subr.bf16.mxu0 0
        %839 = vmatpush1.bf16.msra.mxu0 0
        %840 = vmatprep.subr.bf16.mxu0 0
        %841 = vmatpush1.bf16.msra.mxu0 0
        %842 = vmatprep.subr.bf16.mxu0 0
        %843 = vmatpush1.bf16.msra.mxu0 0
        %844 = vmatprep.subr.bf16.mxu0 0
        %845 = vmatpush1.bf16.msra.mxu0 0
        %846 = vmatprep.mubr.bf16.mxu0 0
        %847 = vmatmul.mubr.bf16.gmra.mrb[0].mxu0 %v573
        %v848 = vpop.f32.mrb[0].mxu0
        %v849 = vadd.f32 %v808, %v848
        %v850 = vpop.f32.mrb[0].mxu0
        %v851 = vpop.f32.mrb[0].mxu0
        %v852 = vadd.f32 %v811, %v851
        %v853 = vpop.f32.mrb[0].mxu0
        %854 = vdwg.mxu0
        %855 = vst [vmem:[%s256] sm:$0xff] %v849
        %856 = vst [vmem:[%s256 + $0x8] sm:$0xff] %v852
        %s857 = sand.u32 %s136, 1
        %s858 = sand.u32 %s136, 1
        %s859 = smul.addr %s858, 16
        %s860 = scalar_lea.vmem [#allocation6], %s859
        // Predicated region
        $region49: #{mlp_pallas.1} parent=39 // pred_check
          %p861 = pneg %p146
        $region50: #{mlp_pallas.1} parent=39 // pred_check_branch
          %863 = sbr.rel (%p861) target = $region52
        $region51: #{mlp_pallas.1} parent=39 // pred_region
          %s864 = smul.u32 2, %s18
          %s865 = ssub.s32 3, %s864
          %p866 = scmp.lt.s32.totalorder %s865, 2
          %s867 = scalar_select %p866, %s865, 2
          %s868 = smul.u32 128, %s867
          %p869 = scmp.ne.s32.totalorder 0, %s868
          %s870 = smul.addr %s864, 8
          %s871 = scalar_lea.vmem %s5, %s870
          // Predicated region
          $region53: #{mlp_pallas.1} parent=51 // pred_check
            %p872 = pneg %p869
          $region54: #{mlp_pallas.1} parent=51 // pred_check_branch
            %874 = sbr.rel (%p872) target = $region56
          $region55: #{mlp_pallas.1} parent=51 // pred_region
            // Predicated region
            $region57: #{mlp_pallas.1} parent=55 // pred_check
              _
            $region58: #{mlp_pallas.1} parent=55 // pred_check_branch
              %876 = sbr.rel (0) target = $region60
            $region59: #{mlp_pallas.1} parent=55 // pred_region
              // Predicated region
              $region79: #{mlp_pallas.1} parent=59 // pred_check
                _
              $region80: #{mlp_pallas.1} parent=59 // pred_check_branch
                %927 = sbr.rel (0) target = $region82
              $region81: #{mlp_pallas.1} parent=59 // pred_region
                %s928 = sshrl.u32 %s867, 1
                // While loop
                $region83: #{mlp_pallas.1} parent=81 // loop_pre_header
                  _
                $region84: #{mlp_pallas.1} parent=81 // loop_header
                  %s930 = sphi 0, %s932
                  %p931 = scmp.ge.s32.totalorder %s930, %s928
                  %s935 = sphi 0, %s944
                  %s936 = sphi %s860, %s947
                  %s937 = sphi %s871, %s948
                $region85: #{mlp_pallas.1} parent=81 // loop_header_branch
                  %934 = sbr.rel (%p931) target = $region89
                $region86: #{mlp_pallas.1} parent=81 // loop_body
                  %v938 = vld [vmem:[%s936] sm:$0xff]
                  %939 = vst [vmem:[%s937] sm:$0xff] %v938
                  %v940 = vld [vmem:[%s936 + $0x8] sm:$0xff]
                  %941 = vst [vmem:[%s937 + $0x8] sm:$0xff] %v940
                  %s942 = sadd.s32 1, %s935
                  %p943 = scmp.ge.s32.totalorder %s942, %s928
                  %s944 = scalar_select %p943, 0, %s942
                  %s945 = smul.u32 %s944, 16
                  %s946 = smul.u32 %s944, 16
                  %s947 = scalar_lea.vmem %s860, %s945 [#allocation6]
                  %s948 = scalar_lea.vmem %s871, %s946
                $region87: #{mlp_pallas.1} parent=81 // loop_footer
                  %s932 = sadd.s32 %s930, 1
                $region88: #{mlp_pallas.1} parent=81 // loop_footer_branch
                  %929 = sbr.rel target = $region84
                $region89: #{mlp_pallas.1} parent=81 // loop_exit
                  _
                %s949 = sshrl.u32 %s867, 1
                %s950 = sand.u32 %s867, 1
                %s951 = smul.u32 %s949, 2
                %s952 = smul.u32 8, %s951
                %s953 = scalar_lea.vmem %s860, %s952 [#allocation6]
                %s954 = smul.u32 8, %s951
                %s955 = scalar_lea.vmem %s871, %s954
                // While loop
                $region90: #{mlp_pallas.1} parent=81 // loop_pre_header
                  _
                $region91: #{mlp_pallas.1} parent=81 // loop_header
                  %s957 = sphi 0, %s959
                  %p958 = scmp.ge.s32.totalorder %s957, %s950
                  %s962 = sphi 0, %s969
                  %s963 = sphi %s953, %s972
                  %s964 = sphi %s955, %s973
                $region92: #{mlp_pallas.1} parent=81 // loop_header_branch
                  %961 = sbr.rel (%p958) target = $region96
                $region93: #{mlp_pallas.1} parent=81 // loop_body
                  %v965 = vld [vmem:[%s963] sm:$0xff]
                  %966 = vst [vmem:[%s964] sm:$0xff] %v965
                  %s967 = sadd.s32 1, %s962
                  %p968 = scmp.ge.s32.totalorder %s967, %s950
                  %s969 = scalar_select %p968, 0, %s967
                  %s970 = smul.u32 %s969, 8
                  %s971 = smul.u32 %s969, 8
                  %s972 = scalar_lea.vmem %s953, %s970 [#allocation6]
                  %s973 = scalar_lea.vmem %s955, %s971
                $region94: #{mlp_pallas.1} parent=81 // loop_footer
                  %s959 = sadd.s32 %s957, 1
                $region95: #{mlp_pallas.1} parent=81 // loop_footer_branch
                  %956 = sbr.rel target = $region91
                $region96: #{mlp_pallas.1} parent=81 // loop_exit
                  _
              $region82: #{mlp_pallas.1} parent=59 // pred_fallthru
                _
              // Predicated region
              $region97: #{mlp_pallas.1} parent=59 // pred_check
                _
              $region98: #{mlp_pallas.1} parent=59 // pred_check_branch
                %975 = sbr.rel target = $region100
              $region99: #{mlp_pallas.1} parent=59 // pred_region
                _
              $region100: #{mlp_pallas.1} parent=59 // pred_fallthru
                _
            $region60: #{mlp_pallas.1} parent=55 // pred_fallthru
              _
            // Predicated region
            $region61: #{mlp_pallas.1} parent=55 // pred_check
              _
            $region62: #{mlp_pallas.1} parent=55 // pred_check_branch
              %878 = sbr.rel target = $region64
            $region63: #{mlp_pallas.1} parent=55 // pred_region
              %s880 = sshrl.u32 %s867, 1
              // While loop
              $region65: #{mlp_pallas.1} parent=63 // loop_pre_header
                _
              $region66: #{mlp_pallas.1} parent=63 // loop_header
                %s882 = sphi 0, %s884
                %p883 = scmp.ge.s32.totalorder %s882, %s880
                %s887 = sphi 0, %s896
                %s888 = sphi %s860, %s899
                %s889 = sphi %s871, %s900
              $region67: #{mlp_pallas.1} parent=63 // loop_header_branch
                %886 = sbr.rel (%p883) target = $region71
              $region68: #{mlp_pallas.1} parent=63 // loop_body
                %v890 = vld [vmem:[%s888] sm:$0xff]
                %891 = vst [vmem:[%s889] sm:$0xff] %v890
                %v892 = vld [vmem:[%s888 + $0x8] sm:$0xff]
                %893 = vst [vmem:[%s889 + $0x8] sm:$0xff] %v892
                %s894 = sadd.s32 1, %s887
                %p895 = scmp.ge.s32.totalorder %s894, %s880
                %s896 = scalar_select %p895, 0, %s894
                %s897 = smul.u32 %s896, 16
                %s898 = smul.u32 %s896, 16
                %s899 = scalar_lea.vmem %s860, %s897 [#allocation6]
                %s900 = scalar_lea.vmem %s871, %s898
              $region69: #{mlp_pallas.1} parent=63 // loop_footer
                %s884 = sadd.s32 %s882, 1
              $region70: #{mlp_pallas.1} parent=63 // loop_footer_branch
                %881 = sbr.rel target = $region66
              $region71: #{mlp_pallas.1} parent=63 // loop_exit
                _
              %s901 = sshrl.u32 %s867, 1
              %s902 = sand.u32 %s867, 1
              %s903 = smul.u32 %s901, 2
              %s904 = smul.u32 8, %s903
              %s905 = scalar_lea.vmem %s860, %s904 [#allocation6]
              %s906 = smul.u32 8, %s903
              %s907 = scalar_lea.vmem %s871, %s906
              // While loop
              $region72: #{mlp_pallas.1} parent=63 // loop_pre_header
                _
              $region73: #{mlp_pallas.1} parent=63 // loop_header
                %s909 = sphi 0, %s911
                %p910 = scmp.ge.s32.totalorder %s909, %s902
                %s914 = sphi 0, %s921
                %s915 = sphi %s905, %s924
                %s916 = sphi %s907, %s925
              $region74: #{mlp_pallas.1} parent=63 // loop_header_branch
                %913 = sbr.rel (%p910) target = $region78
              $region75: #{mlp_pallas.1} parent=63 // loop_body
                %v917 = vld [vmem:[%s915] sm:$0xff]
                %918 = vst [vmem:[%s916] sm:$0xff] %v917
                %s919 = sadd.s32 1, %s914
                %p920 = scmp.ge.s32.totalorder %s919, %s902
                %s921 = scalar_select %p920, 0, %s919
                %s922 = smul.u32 %s921, 8
                %s923 = smul.u32 %s921, 8
                %s924 = scalar_lea.vmem %s905, %s922 [#allocation6]
                %s925 = scalar_lea.vmem %s907, %s923
              $region76: #{mlp_pallas.1} parent=63 // loop_footer
                %s911 = sadd.s32 %s909, 1
              $region77: #{mlp_pallas.1} parent=63 // loop_footer_branch
                %908 = sbr.rel target = $region73
              $region78: #{mlp_pallas.1} parent=63 // loop_exit
                _
            $region64: #{mlp_pallas.1} parent=55 // pred_fallthru
              _
          $region56: #{mlp_pallas.1} parent=51 // pred_fallthru
            _
          %976 = vnop
        $region52: #{mlp_pallas.1} parent=39 // pred_fallthru
          _
      $region40: #{mlp_pallas.1} parent=5 // pred_fallthru
        _
      %p977 = scmp.le.s32.totalorder 2, %s13
      // Predicated region
      $region101: #{mlp_pallas.1} parent=5 // pred_check
        %p978 = pneg %p977
      $region102: #{mlp_pallas.1} parent=5 // pred_check_branch
        %980 = sbr.rel (%p978) target = $region104
      $region103: #{mlp_pallas.1} parent=5 // pred_region
        %s981 = ssub.s32 %s13, 2
        // Predicated region
        $region105: #{mlp_pallas.1} parent=103 // pred_check
          %p982 = pneg %p152
        $region106: #{mlp_pallas.1} parent=103 // pred_check_branch
          %984 = sbr.rel (%p982) target = $region108
        $region107: #{mlp_pallas.1} parent=103 // pred_region
          %s985 = sand.u32 %s137, 1
          %s986 = sand.u32 %s137, 1
          %s987 = smul.addr %s986, 16
          %s988 = scalar_lea.vmem [#allocation6], %s987
        $region108: #{mlp_pallas.1} parent=103 // pred_fallthru
          _
      $region104: #{mlp_pallas.1} parent=5 // pred_fallthru
        _
    $region6: #{mlp_pallas.1} parent=1 // loop_footer
      %s17 = sadd.s32 1, %s13
    $region7: #{mlp_pallas.1} parent=1 // loop_footer_branch
      %12 = sbr.rel target = $region3
    $region8: #{mlp_pallas.1} parent=1 // loop_exit
      _
    %989 = vsyncpa [#allocation3], 1
    %s990 = scalar_lea.sflag [#allocation3], 1
    %991 = vsyncpa %s990, 1
    %992 = vsyncpa [#allocation5], 1

</llo_original>
